<compile_context>
chip_gen: v7x
topology: tpu7x:2x2x1
jax: 0.10.0
libtpu: 0.0.40
codegen_flags: <defaults>
</compile_context>

<pallas_src>
import jax
import jax.numpy as jnp
from jax.experimental import pallas as pl
from jax.experimental.pallas import tpu as pltpu

# Issue roughly one DMA per this many bytes (engages multiple DMA queues for
# very large tensors); capped so the unrolled start/wait loop stays tiny.
_CHUNK_BYTES = 64 * 1024 * 1024
_MAX_CHUNKS = 8


def _make_identity_dma_kernel(n_chunks, rows_per_chunk):
    """HBM->HBM copy kernel: n_chunks concurrent DMAs, then wait on all."""

    def kernel(x_hbm, o_hbm, sems):
        if n_chunks == 1:
            cp = pltpu.make_async_copy(x_hbm, o_hbm, sems.at[0])
            cp.start()
            cp.wait()
        else:
            copies = []
            for c in range(n_chunks):  # static unroll; starts overlap
                start = c * rows_per_chunk
                cp = pltpu.make_async_copy(
                    x_hbm.at[pl.ds(start, rows_per_chunk)],
                    o_hbm.at[pl.ds(start, rows_per_chunk)],
                    sems.at[c],
                )
                cp.start()
                copies.append(cp)
            for cp in copies:
                cp.wait()

    return kernel


def base_head_forward(x, materialize=True):
    """BaseHead.forward(x) == Identity(x).

    materialize=False returns `x` untouched (zero HBM traffic — the right
    choice for a pure Identity head).  materialize=True produces a fresh
    buffer via a single-pass HBM->HBM DMA Pallas kernel.
    """
    if not materialize:
        return x

    itemsize = jnp.dtype(x.dtype).itemsize
    total_bytes = int(x.size) * itemsize

    # Chunk along the leading dim only if it divides evenly and the tensor is
    # large enough to benefit; otherwise one whole-array DMA.
    n_chunks = 1
    if x.ndim >= 1 and x.shape[0] > 1:
        want = int(min(_MAX_CHUNKS, max(1, total_bytes // _CHUNK_BYTES)))
        for c in range(min(want, x.shape[0]), 0, -1):
            if x.shape[0] % c == 0:
                n_chunks = c
                break
    rows_per_chunk = (x.shape[0] // n_chunks) if x.ndim >= 1 else 0

    return pl.pallas_call(
        _make_identity_dma_kernel(n_chunks, rows_per_chunk),
        out_shape=jax.ShapeDtypeStruct(x.shape, x.dtype),
        in_specs=[pl.BlockSpec(memory_space=pl.ANY)],
        out_specs=pl.BlockSpec(memory_space=pl.ANY),
        scratch_shapes=[pltpu.SemaphoreType.DMA((n_chunks,))],
        cost_estimate=pl.CostEstimate(
            flops=0, transcendentals=0, bytes_accessed=2 * total_bytes
        ),
    )(x)


def run_head(backbone_features, batch, head_name, x_key, stage="train",
             n_postprocess=1, run_forward=True, y_hat=None,
             materialize_forward=False):
    """JAX analog of BaseHead.run_head.

    The Identity forward defaults to the zero-copy path (return x); set
    materialize_forward=True to force the DMA-copy kernel.
    """
    if run_forward:
        y_hat = base_head_forward(backbone_features,
                                  materialize=materialize_forward)
    if y_hat is None:
        raise ValueError(
            "y_hat must be provided, either by passing it in or setting "
            "`run_forward=True`"
        )
    loss = None
    if stage != "predict":
        # TODO(synk): loss function is injected in __init__ in the original
        # module; MSE is used here as a deterministic stand-in.
        loss = jnp.mean((y_hat - batch[head_name]) ** 2)

    detach = jax.lax.stop_gradient

    def postprocess(img):
        # TODO(synk): original postprocess dict is injected; `detach` default
        # is reproduced with stop_gradient on the first n_postprocess items.
        return [detach(img[i]) for i in range(n_postprocess)]

    return {
        "loss": loss,
        "pred": postprocess(y_hat),
        "target": postprocess(batch[head_name]) if stage != "predict" else None,
        "input": postprocess(batch[x_key]) if stage != "predict" else None,
    }


if __name__ == "__main__":
    key = jax.random.PRNGKey(0)
    k1, k2 = jax.random.split(key)

    N, C, H, W = 2, 4, 16, 16
    x = jax.random.normal(k1, (N, C, H, W), dtype=jnp.float32)
    target = jax.random.normal(k2, (N, C, H, W), dtype=jnp.float32)

    batch = {"seg": target, "raw": x}

    # Forward via the Pallas HBM->HBM DMA kernel — identity semantics.
    y_hat = base_head_forward(x, materialize=True)
    y_hat = jax.block_until_ready(y_hat)
    assert y_hat.shape == x.shape and y_hat.dtype == x.dtype
    assert bool(jnp.allclose(y_hat, x)), "identity forward mismatch"

    # Zero-copy fast path (what run_head uses by default).
    y_fast = base_head_forward(x, materialize=False)
    assert bool(jnp.allclose(y_fast, x))

    # Full run_head path for completeness.
    out = run_head(x, batch, head_name="seg", x_key="raw", stage="train",
                   n_postprocess=1)
    jax.block_until_ready(out["loss"])
    jax.block_until_ready(out["pred"][0])

    print("KERNEL_OK")
</pallas_src>

<mosaic_0001>
module attributes {stable_mosaic.version = 11 : i64} {
  func.func @kernel(%arg0: memref<2x4x16x16xf32, #tpu.memory_space<any>>, %arg1: memref<2x4x16x16xf32, #tpu.memory_space<any>>, %arg2: memref<1x!tpu.dma_semaphore, #tpu.memory_space<semaphore_mem>>) attributes {dimension_semantics = [], scalar_prefetch = 0 : i64, scratch_operands = 1 : i64, tpu.core_type = #tpu.core_type<tc>} {
    %c0_i32 = arith.constant 0 : i32
    %0 = tpu.memref_slice %arg2[%c0_i32] : memref<1x!tpu.dma_semaphore, #tpu.memory_space<semaphore_mem>> -> memref<1x!tpu.dma_semaphore, #tpu.memory_space<semaphore_mem>>
    %1 = tpu.memref_squeeze %0 : memref<1x!tpu.dma_semaphore, #tpu.memory_space<semaphore_mem>> -> memref<!tpu.dma_semaphore, #tpu.memory_space<semaphore_mem>>
    tpu.enqueue_dma source(%arg0 : memref<2x4x16x16xf32, #tpu.memory_space<any>>) target(%arg1 : memref<2x4x16x16xf32, #tpu.memory_space<any>>) target_semaphore(%1 : memref<!tpu.dma_semaphore, #tpu.memory_space<semaphore_mem>>)
    %c0_i32_0 = arith.constant 0 : i32
    %2 = tpu.memref_slice %arg2[%c0_i32_0] : memref<1x!tpu.dma_semaphore, #tpu.memory_space<semaphore_mem>> -> memref<1x!tpu.dma_semaphore, #tpu.memory_space<semaphore_mem>>
    %3 = tpu.memref_squeeze %2 : memref<1x!tpu.dma_semaphore, #tpu.memory_space<semaphore_mem>> -> memref<!tpu.dma_semaphore, #tpu.memory_space<semaphore_mem>>
    tpu.wait_dma2 semaphore(%3 : memref<!tpu.dma_semaphore, #tpu.memory_space<semaphore_mem>>) src(%arg0 : memref<2x4x16x16xf32, #tpu.memory_space<any>>) dst(%arg1 : memref<2x4x16x16xf32, #tpu.memory_space<any>>)
    return
  }
}

</mosaic_0001>

<llo_original>
// kernel: tpu_custom_call.1
$region0: #{tpu_custom_call.1}
  #allocation0 [shape = 'u32[]', space=smem, size = 0x4, offset = 0x4, fixed_abs, tag = 'smem constant byte address 0x4 - core index']
  #allocation1 [shape = 'u32[144,128]{1,0:T(1,128)}', space=vmem, size = 0x12000, scoped, tag = 'internal scratch']
  #allocation2 [shape = 's32[1]{0}', space=sflag, size = 0x4, scoped, tag = 'scratch operand']
  #allocation3 [shape = 's32[]', space=sflag, size = 0x4, offset = 0, fixed_abs, tag = 'sflag constant byte address 0x0 - dummy sync flag']
  #allocation4 [shape = 'u32[0]{0}', space=smem, size = 0, offset = 0, fixed_abs, tag = 'smem constant byte address 0x0 - null']
  %s0 = inlined_call_operand.hbm [shape: f32[2,4,16,16], index: 0, kind: input, shape index: {}]
  %s1 = inlined_call_operand.hbm [shape: f32[2,4,16,16], index: 1, kind: output, shape index: {}]
  %s2 = sld [smem:[#allocation0]]
  $region2: #{tpu_custom_call.1} parent=0
    _
  %s4 = ssub.s32 1, %s2
  %s5 = scalar_select 0, %s4, %s2
  %s7 = sshll.u32 1, 14
  %s8 = sxor.u32 4294967295, %s7
  %s11 = sshll.u32 3, 24
  %s12 = sxor.u32 4294967295, %s11
  %s13 = sand.u32 0, %s12
  %s15 = sor.u32 %s13, 0
  %18 = dma.general %s0, 2048, %s1, [#allocation2], [#allocation3], [#allocation4], %s15, 0
  %s19 = smul.u32 2, 4
  %s20 = smul.u32 %s19, 16
  %s21 = smul.u32 %s20, 1
  %s22 = sshll.u32 %s21, 4
  %23 = dma.done [#allocation2], %s22
  %24 = vsyncmov [#allocation2]
  %s25 = vpop.sfrf %24
  %p26 = scmp.eq.s32.totalorder %s25, 0
  %p27 = pneg %p26
  %29 = shalt.err (%p27)

</llo_original>
